<compile_context>
chip_gen: v5e
topology: v5e:2x2
jax: 0.10.0
libtpu: 0.0.40
codegen_flags: <defaults>
</compile_context>

<pallas_src>
import math
from functools import partial

import jax
import jax.numpy as jnp
from jax.experimental import pallas as pl
from jax.experimental.pallas import tpu as pltpu


# Scoped VMEM budget: <= 48 MiB is safe on v7x (64 MiB physical) and still a
# healthy raise over the conservative defaults on v5e / v6e (128 MiB physical).
VMEM_LIMIT = 48 * 1024 * 1024


def _pick(dim, preferred, align):
    """Largest preferred tile that divides `dim` and is `align`-aligned, else full dim."""
    # TODO(synk): replace the full-dim fallback with pl.cdiv grids + padded edge tiles
    # for dims that are large and not nicely divisible.
    for t in preferred:
        if dim % t == 0 and t % align == 0:
            return t
    return dim


# --------------------------------------------------------------------------- #
# Tiled matmul (+ optional bias, fused tanh-GELU, fused residual add)
# --------------------------------------------------------------------------- #
def _gelu_tanh(x):
    c = math.sqrt(2.0 / math.pi)
    return 0.5 * x * (1.0 + jnp.tanh(c * (x + 0.044715 * x * x * x)))


def _make_matmul_kernel(has_bias, has_residual, activation):
    def kernel(*refs):
        i = 0
        a_ref = refs[i]; i += 1
        b_ref = refs[i]; i += 1
        bias_ref = None
        res_ref = None
        if has_bias:
            bias_ref = refs[i]; i += 1
        if has_residual:
            res_ref = refs[i]; i += 1
        o_ref = refs[i]; i += 1
        acc_ref = refs[i]

        @pl.when(pl.program_id(2) == 0)
        def _():
            acc_ref[...] = jnp.zeros_like(acc_ref)

        acc_ref[...] += jnp.dot(a_ref[...], b_ref[...],
                                preferred_element_type=jnp.float32)

        @pl.when(pl.program_id(2) == pl.num_programs(2) - 1)
        def _():
            out = acc_ref[...]
            if bias_ref is not None:
                out = out + bias_ref[...].astype(jnp.float32)
            if activation == "gelu_tanh":
                out = _gelu_tanh(out)
            if res_ref is not None:
                out = out + res_ref[...].astype(jnp.float32)
            o_ref[...] = out.astype(o_ref.dtype)

    return kernel


def matmul(a, b, bias=None, residual=None, activation=None, out_dtype=None):
    """a: (M, K) @ b: (K, N) [+ bias (N,)] [-> tanh-GELU] [+ residual (M, N)]."""
    M, K = a.shape
    K2, N = b.shape
    assert K == K2
    out_dtype = out_dtype if out_dtype is not None else a.dtype

    tm = _pick(M, (512, 256, 128, 64, 32, 16, 8), 8)
    tn = _pick(N, (512, 256, 128), 128)
    tk = _pick(K, (512, 256, 128), 128)
    grid = (M // tm, N // tn, K // tk)

    in_specs = [
        pl.BlockSpec((tm, tk), lambda i, j, k: (i, k)),
        pl.BlockSpec((tk, tn), lambda i, j, k: (k, j)),
    ]
    args = [a, b]
    has_bias = bias is not None
    has_residual = residual is not None
    if has_bias:
        in_specs.append(pl.BlockSpec((1, tn), lambda i, j, k: (0, j)))
        args.append(bias.reshape(1, N))
    if has_residual:
        in_specs.append(pl.BlockSpec((tm, tn), lambda i, j, k: (i, j)))
        args.append(residual)

    itemsize = jnp.dtype(a.dtype).itemsize
    cost = pl.CostEstimate(
        flops=2 * M * N * K,
        transcendentals=(M * N if activation == "gelu_tanh" else 0),
        bytes_accessed=(M * K + K * N + M * N
                        + (M * N if has_residual else 0)) * itemsize,
    )

    return pl.pallas_call(
        _make_matmul_kernel(has_bias, has_residual, activation),
        out_shape=jax.ShapeDtypeStruct((M, N), out_dtype),
        grid_spec=pltpu.PrefetchScalarGridSpec(
            num_scalar_prefetch=0,
            grid=grid,
            in_specs=in_specs,
            out_specs=pl.BlockSpec((tm, tn), lambda i, j, k: (i, j)),
            scratch_shapes=[pltpu.VMEM((tm, tn), jnp.float32)],
        ),
        compiler_params=pltpu.CompilerParams(
            dimension_semantics=("parallel", "parallel", "arbitrary"),
            vmem_limit_bytes=VMEM_LIMIT,
        ),
        cost_estimate=cost,
    )(*args)


# --------------------------------------------------------------------------- #
# Fused LayerNorm over the last axis (row tile derived from a byte budget)
# --------------------------------------------------------------------------- #
def _layernorm_kernel(x_ref, g_ref, b_ref, o_ref, *, eps):
    x = x_ref[...].astype(jnp.float32)
    mean = jnp.mean(x, axis=-1, keepdims=True)
    xc = x - mean
    var = jnp.mean(xc * xc, axis=-1, keepdims=True)
    inv = jax.lax.rsqrt(var + eps)
    y = xc * inv * g_ref[...].astype(jnp.float32) + b_ref[...].astype(jnp.float32)
    o_ref[...] = y.astype(o_ref.dtype)


def layernorm(x, gamma, beta, eps=1e-5):
    orig_shape = x.shape
    E = orig_shape[-1]
    x2 = x.reshape(-1, E)
    n_rows = x2.shape[0]

    # in + out, double-buffered, must stay well under the scoped budget.
    itemsize = jnp.dtype(x.dtype).itemsize
    max_rows = max(8, (VMEM_LIMIT // 2) // (4 * E * itemsize))
    cands = tuple(t for t in (2048, 1024, 512, 256, 128, 64, 32, 16, 8)
                  if t <= max_rows)
    tr = _pick(n_rows, cands, 8)
    grid = (n_rows // tr,)

    out = pl.pallas_call(
        partial(_layernorm_kernel, eps=eps),
        out_shape=jax.ShapeDtypeStruct((n_rows, E), x.dtype),
        grid_spec=pltpu.PrefetchScalarGridSpec(
            num_scalar_prefetch=0,
            grid=grid,
            in_specs=[
                pl.BlockSpec((tr, E), lambda i: (i, 0)),
                pl.BlockSpec((1, E), lambda i: (0, 0)),
                pl.BlockSpec((1, E), lambda i: (0, 0)),
            ],
            out_specs=pl.BlockSpec((tr, E), lambda i: (i, 0)),
        ),
        compiler_params=pltpu.CompilerParams(
            dimension_semantics=("parallel",),
            vmem_limit_bytes=VMEM_LIMIT,
        ),
    )(x2, gamma.reshape(1, E), beta.reshape(1, E))
    return out.reshape(orig_shape)


# --------------------------------------------------------------------------- #
# Flash-style attention: grid (B, q_tiles, kv_tiles), all heads per block,
# online softmax in f32 VMEM scratch, lane-dense (tq, E) output stores.
# --------------------------------------------------------------------------- #
def _make_attn_kernel(n_head, d_head, tq, tk, scale, causal):
    def kernel(q_ref, k_ref, v_ref, o_ref, m_ref, l_ref, acc_ref):
        qi = pl.program_id(1)
        ki = pl.program_id(2)

        @pl.when(ki == 0)
        def _():
            m_ref[...] = jnp.full_like(m_ref, -jnp.inf)
            l_ref[...] = jnp.zeros_like(l_ref)
            acc_ref[...] = jnp.zeros_like(acc_ref)

        def compute():
            q = q_ref[...].astype(jnp.float32) * scale   # (tq, E), scale folded into q
            k = k_ref[...].astype(jnp.float32)           # (tk, E)
            v = v_ref[...].astype(jnp.float32)           # (tk, E)
            if causal:
                row = jax.lax.broadcasted_iota(jnp.int32, (tq, tk), 0) + qi * tq
                col = jax.lax.broadcasted_iota(jnp.int32, (tq, tk), 1) + ki * tk
                neg = jnp.where(col <= row, 0.0, -1e30).astype(jnp.float32)
            # Static per-head loop over the lane-dense slab (heads are column slices).
            for h in range(n_head):
                sl = slice(h * d_head, (h + 1) * d_head)
                # Q . K^T without an explicit K transpose (contract last dims).
                s = jax.lax.dot_general(
                    q[:, sl], k[:, sl],
                    dimension_numbers=(((1,), (1,)), ((), ())),
                    preferred_element_type=jnp.float32)          # (tq, tk)
                if causal:
                    s = s + neg
                m_prev = m_ref[:, sl]                            # columns all equal
                l_prev = l_ref[:, sl]
                m_new = jnp.maximum(m_prev, jnp.max(s, axis=-1, keepdims=True))
                alpha = jnp.exp(m_prev - m_new)
                p = jnp.exp(s - jnp.max(m_new, axis=-1, keepdims=True))
                l_ref[:, sl] = alpha * l_prev + jnp.sum(p, axis=-1, keepdims=True)
                acc_ref[:, sl] = alpha * acc_ref[:, sl] + jnp.dot(
                    p, v[:, sl], preferred_element_type=jnp.float32)
                m_ref[:, sl] = m_new

        if causal:
            # Skip kv tiles that lie entirely above the diagonal (fully masked).
            @pl.when(ki * tk <= qi * tq + (tq - 1))
            def _():
                compute()
        else:
            compute()

        @pl.when(ki == pl.num_programs(2) - 1)
        def _():
            # Single lane-dense store of the whole (tq, E) block.
            o_ref[...] = (acc_ref[...] / l_ref[...]).astype(o_ref.dtype)

    return kernel


def _flash_attention(q_spec, k_spec, v_spec, *, n_head, causal, B, Sq, Sk, E,
                     out_dtype):
    """q/k/v specs are (array, column_block_index) pairs; each array has shape
    (B, S, c*E) and the column index selects which E-wide block is Q/K/V, so a
    fused QKV projection is consumed without any XLA-side slicing."""
    (q_arr, q_col), (k_arr, k_col), (v_arr, v_col) = q_spec, k_spec, v_spec
    d_head = E // n_head
    scale = 1.0 / math.sqrt(d_head)
    itemsize = jnp.dtype(q_arr.dtype).itemsize

    def fits(tq, tk):
        blocks = 2 * (2 * tq * E + 2 * tk * E) * itemsize   # q,o + k,v double-buffered
        scratch = 3 * tq * E * 4                            # m, l, acc (f32)
        return blocks + scratch <= VMEM_LIMIT // 2

    tq_cands = [t for t in (512, 256, 128) if Sq % t == 0] or [Sq]
    tk_cands = [t for t in (512, 256, 128) if Sk % t == 0] or [Sk]
    tq, tk = tq_cands[-1], tk_cands[-1]
    done = False
    for tq_c in tq_cands:
        for tk_c in tk_cands:
            if fits(tq_c, tk_c):
                tq, tk, done = tq_c, tk_c, True
                break
        if done:
            break

    grid = (B, Sq // tq, Sk // tk)

    cost = pl.CostEstimate(
        flops=4 * B * Sq * Sk * E,
        transcendentals=B * n_head * Sq * Sk,
        bytes_accessed=(2 * B * Sq * E + 2 * B * Sk * E) * itemsize,
    )

    return pl.pallas_call(
        _make_attn_kernel(n_head, d_head, tq, tk, scale, causal),
        out_shape=jax.ShapeDtypeStruct((B, Sq, E), out_dtype),
        grid_spec=pltpu.PrefetchScalarGridSpec(
            num_scalar_prefetch=0,
            grid=grid,
            in_specs=[
                pl.BlockSpec((None, tq, E), lambda b, qi, ki, c=q_col: (b, qi, c)),
                pl.BlockSpec((None, tk, E), lambda b, qi, ki, c=k_col: (b, ki, c)),
                pl.BlockSpec((None, tk, E), lambda b, qi, ki, c=v_col: (b, ki, c)),
            ],
            out_specs=pl.BlockSpec((None, tq, E), lambda b, qi, ki: (b, qi, 0)),
            scratch_shapes=[pltpu.VMEM((tq, E), jnp.float32) for _ in range(3)],
        ),
        compiler_params=pltpu.CompilerParams(
            dimension_semantics=("parallel", "parallel", "arbitrary"),
            vmem_limit_bytes=VMEM_LIMIT,
        ),
        cost_estimate=cost,
    )(q_arr, k_arr, v_arr)


# --------------------------------------------------------------------------- #
# Module-level forward (wrappers)
# --------------------------------------------------------------------------- #
def attention_layer(q_in, kv_in, p, n_head, *, causal, residual):
    """Matches PyTorch SelfAttention.forward (bias-free projections), with the
    residual add fused into the output-projection matmul epilogue."""
    B, Sq, E = q_in.shape
    Sk = kv_in.shape[1]
    fused_cols_ok = (E % 128 == 0)   # column-block trick needs a lane-aligned E

    if q_in is kv_in:
        # Self-attention: fused (E, 3E) QKV projection, one activation read.
        w_qkv = jnp.concatenate([p["W_q"], p["W_k"], p["W_v"]], axis=1)
        qkv = matmul(q_in.reshape(B * Sq, E), w_qkv).reshape(B, Sq, 3 * E)
        if fused_cols_ok:
            q_spec, k_spec, v_spec = (qkv, 0), (qkv, 1), (qkv, 2)
        else:
            qs, ks, vs = jnp.split(qkv, 3, axis=-1)
            q_spec, k_spec, v_spec = (qs, 0), (ks, 0), (vs, 0)
    else:
        # Cross-attention: Q from the decoder stream, fused (E, 2E) K/V from encoder.
        q = matmul(q_in.reshape(B * Sq, E), p["W_q"]).reshape(B, Sq, E)
        w_kv = jnp.concatenate([p["W_k"], p["W_v"]], axis=1)
        kv = matmul(kv_in.reshape(B * Sk, E), w_kv).reshape(B, Sk, 2 * E)
        if fused_cols_ok:
            q_spec, k_spec, v_spec = (q, 0), (kv, 0), (kv, 1)
        else:
            ks, vs = jnp.split(kv, 2, axis=-1)
            q_spec, k_spec, v_spec = (q, 0), (ks, 0), (vs, 0)

    attn = _flash_attention(q_spec, k_spec, v_spec, n_head=n_head, causal=causal,
                            B=B, Sq=Sq, Sk=Sk, E=E, out_dtype=q_in.dtype)
    out = matmul(attn.reshape(B * Sq, E), p["W_out"],
                 residual=residual.reshape(B * Sq, E))
    return out.reshape(B, Sq, E)


def mlp_layer(x_norm, p, residual):
    B, S, E = x_norm.shape
    h = matmul(x_norm.reshape(B * S, E), p["fc1_w"], bias=p["fc1_b"],
               activation="gelu_tanh")
    o = matmul(h, p["fc2_w"], bias=p["fc2_b"],
               residual=residual.reshape(B * S, E))
    return o.reshape(B, S, E)


def decoder_block(x, enc_output, params, n_head, src_mask=None, trg_mask=None):
    xn = layernorm(x, params["ln1_g"], params["ln1_b"])
    x = attention_layer(xn, xn, params["attn1"], n_head, causal=True, residual=x)
    xn = layernorm(x, params["ln2_g"], params["ln2_b"])
    x = attention_layer(xn, enc_output, params["attn2"], n_head, causal=False,
                        residual=x)
    xn = layernorm(x, params["ln3_g"], params["ln3_b"])
    x = mlp_layer(xn, params["mlp"], residual=x)
    return x  # dropout: identity in eval mode


# --------------------------------------------------------------------------- #
# Pure-JAX reference (mirrors the PyTorch semantics, eval mode)
# --------------------------------------------------------------------------- #
def _ref_layernorm(x, g, b, eps=1e-5):
    mean = x.mean(-1, keepdims=True)
    var = ((x - mean) ** 2).mean(-1, keepdims=True)
    return (x - mean) / jnp.sqrt(var + eps) * g + b


def _ref_attention(qi, ki, vi, p, n_head, causal):
    B, Sq, E = qi.shape
    Sk = ki.shape[1]
    Dh = E // n_head
    q = (qi @ p["W_q"]).reshape(B, Sq, n_head, Dh).transpose(0, 2, 1, 3)
    k = (ki @ p["W_k"]).reshape(B, Sk, n_head, Dh).transpose(0, 2, 1, 3)
    v = (vi @ p["W_v"]).reshape(B, Sk, n_head, Dh).transpose(0, 2, 1, 3)
    s = jnp.einsum("bhqd,bhkd->bhqk", q, k) / math.sqrt(Dh)
    if causal:
        mask = jnp.tril(jnp.ones((Sq, Sk), bool))
        s = jnp.where(mask, s, -1e30)
    a = jax.nn.softmax(s, axis=-1)
    o = jnp.einsum("bhqk,bhkd->bhqd", a, v).transpose(0, 2, 1, 3).reshape(B, Sq, E)
    return o @ p["W_out"]


def _ref_mlp(x, p):
    h = jax.nn.gelu(x @ p["fc1_w"] + p["fc1_b"], approximate=True)
    return h @ p["fc2_w"] + p["fc2_b"]


def _ref_decoder_block(x, enc, params, n_head):
    xn = _ref_layernorm(x, params["ln1_g"], params["ln1_b"])
    x = x + _ref_attention(xn, xn, xn, params["attn1"], n_head, True)
    xn = _ref_layernorm(x, params["ln2_g"], params["ln2_b"])
    x = x + _ref_attention(xn, enc, enc, params["attn2"], n_head, False)
    xn = _ref_layernorm(x, params["ln3_g"], params["ln3_b"])
    x = x + _ref_mlp(xn, params["mlp"])
    return x


# --------------------------------------------------------------------------- #
if __name__ == "__main__":
    B, S_tgt, S_src = 2, 8, 8
    n_embed, n_head, n_hidden = 128, 4, 256

    key = jax.random.PRNGKey(0)
    keys = jax.random.split(key, 20)
    std = 0.05

    def nrm(k, shape):
        return std * jax.random.normal(k, shape, dtype=jnp.float32)

    params = {
        "ln1_g": 1.0 + nrm(keys[14], (n_embed,)),
        "ln1_b": nrm(keys[15], (n_embed,)),
        "ln2_g": 1.0 + nrm(keys[16], (n_embed,)),
        "ln2_b": nrm(keys[17], (n_embed,)),
        "ln3_g": 1.0 + nrm(keys[18], (n_embed,)),
        "ln3_b": nrm(keys[19], (n_embed,)),
        "attn1": {
            "W_q": nrm(keys[0], (n_embed, n_embed)),
            "W_k": nrm(keys[1], (n_embed, n_embed)),
            "W_v": nrm(keys[2], (n_embed, n_embed)),
            "W_out": nrm(keys[3], (n_embed, n_embed)),
        },
        "attn2": {
            "W_q": nrm(keys[4], (n_embed, n_embed)),
            "W_k": nrm(keys[5], (n_embed, n_embed)),
            "W_v": nrm(keys[6], (n_embed, n_embed)),
            "W_out": nrm(keys[7], (n_embed, n_embed)),
        },
        "mlp": {
            "fc1_w": nrm(keys[8], (n_embed, n_hidden)),
            "fc1_b": nrm(keys[9], (n_hidden,)),
            "fc2_w": nrm(keys[10], (n_hidden, n_embed)),
            "fc2_b": nrm(keys[11], (n_embed,)),
        },
    }

    x = jax.random.normal(keys[12], (B, S_tgt, n_embed), dtype=jnp.float32)
    enc = jax.random.normal(keys[13], (B, S_src, n_embed), dtype=jnp.float32)

    out = decoder_block(x, enc, params, n_head)
    out = jax.block_until_ready(out)

    ref = _ref_decoder_block(x, enc, params, n_head)
    assert out.shape == (B, S_tgt, n_embed)
    max_err = float(jnp.max(jnp.abs(out - ref)))
    assert jnp.allclose(out, ref, atol=2e-4, rtol=2e-4), f"max abs err {max_err}"

    print("KERNEL_OK")
</pallas_src>

<mosaic_0001>
module attributes {stable_mosaic.version = 11 : i64} {
  func.func @_layernorm_kernel(%arg0: i32, %arg1: memref<16x128xf32, #tpu.memory_space<vmem>>, %arg2: memref<1x128xf32, #tpu.memory_space<vmem>>, %arg3: memref<1x128xf32, #tpu.memory_space<vmem>>, %arg4: memref<16x128xf32, #tpu.memory_space<vmem>>) attributes {dimension_semantics = [#tpu.dimension_semantics<parallel>], iteration_bounds = array<i64: 1>, scalar_prefetch = 0 : i64, scratch_operands = 0 : i64, tpu.core_type = #tpu.core_type<tc>, window_params = [{transform_indices = @transform_0, window_bounds = array<i64: 16, 128>}, {pipeline_mode = #tpu.pipeline_mode<synchronous>, transform_indices = @transform_1, window_bounds = array<i64: 1, 128>}, {pipeline_mode = #tpu.pipeline_mode<synchronous>, transform_indices = @transform_2, window_bounds = array<i64: 1, 128>}, {transform_indices = @transform_3, window_bounds = array<i64: 16, 128>}]} {
    %c0 = arith.constant 0 : index
    %c0_0 = arith.constant 0 : index
    %0 = vector.load %arg1[%c0, %c0_0] : memref<16x128xf32, #tpu.memory_space<vmem>>, vector<16x128xf32>
    %cst = arith.constant dense<0.000000e+00> : vector<16xf32>
    %1 = vector.multi_reduction <add>, %0, %cst [1] : vector<16x128xf32> to vector<16xf32>
    %2 = vector.shape_cast %1 : vector<16xf32> to vector<16x1xf32>
    %cst_1 = arith.constant 1.280000e+02 : f32
    %3 = vector.broadcast %cst_1 : f32 to vector<16x1xf32>
    %4 = arith.divf %2, %3 : vector<16x1xf32>
    %5 = vector.broadcast %4 : vector<16x1xf32> to vector<16x128xf32>
    %6 = arith.subf %0, %5 : vector<16x128xf32>
    %7 = arith.mulf %6, %6 : vector<16x128xf32>
    %cst_2 = arith.constant dense<0.000000e+00> : vector<16xf32>
    %8 = vector.multi_reduction <add>, %7, %cst_2 [1] : vector<16x128xf32> to vector<16xf32>
    %9 = vector.shape_cast %8 : vector<16xf32> to vector<16x1xf32>
    %cst_3 = arith.constant 1.280000e+02 : f32
    %10 = vector.broadcast %cst_3 : f32 to vector<16x1xf32>
    %11 = arith.divf %9, %10 : vector<16x1xf32>
    %cst_4 = arith.constant 9.99999974E-6 : f32
    %12 = vector.broadcast %cst_4 : f32 to vector<16x1xf32>
    %13 = arith.addf %11, %12 : vector<16x1xf32>
    %14 = math.rsqrt %13 : vector<16x1xf32>
    %15 = vector.broadcast %14 : vector<16x1xf32> to vector<16x128xf32>
    %16 = arith.mulf %6, %15 : vector<16x128xf32>
    %c0_5 = arith.constant 0 : index
    %c0_6 = arith.constant 0 : index
    %17 = vector.load %arg2[%c0_5, %c0_6] : memref<1x128xf32, #tpu.memory_space<vmem>>, vector<1x128xf32>
    %18 = vector.broadcast %17 : vector<1x128xf32> to vector<16x128xf32>
    %19 = arith.mulf %16, %18 : vector<16x128xf32>
    %c0_7 = arith.constant 0 : index
    %c0_8 = arith.constant 0 : index
    %20 = vector.load %arg3[%c0_7, %c0_8] : memref<1x128xf32, #tpu.memory_space<vmem>>, vector<1x128xf32>
    %21 = vector.broadcast %20 : vector<1x128xf32> to vector<16x128xf32>
    %22 = arith.addf %19, %21 : vector<16x128xf32>
    %c0_9 = arith.constant 0 : index
    %c0_10 = arith.constant 0 : index
    %23 = vector.load %arg4[%c0_9, %c0_10] : memref<16x128xf32, #tpu.memory_space<vmem>>, vector<16x128xf32>
    tpu.vector_store %arg4[%c0_9, %c0_10], %22 {strides = array<i32>} : memref<16x128xf32, #tpu.memory_space<vmem>>, vector<16x128xf32>,
    return
  }
  func.func @transform_0(%arg0: i32) -> (i32, i32) {
    %c0_i32 = arith.constant 0 : i32
    %c0_i32_0 = arith.constant 0 : i32
    return %arg0, %c0_i32 : i32, i32
  }
  func.func @transform_1(%arg0: i32) -> (i32, i32) {
    %c0_i32 = arith.constant 0 : i32
    %c0_i32_0 = arith.constant 0 : i32
    %c0_i32_1 = arith.constant 0 : i32
    return %c0_i32, %c0_i32_0 : i32, i32
  }
  func.func @transform_2(%arg0: i32) -> (i32, i32) {
    %c0_i32 = arith.constant 0 : i32
    %c0_i32_0 = arith.constant 0 : i32
    %c0_i32_1 = arith.constant 0 : i32
    return %c0_i32, %c0_i32_0 : i32, i32
  }
  func.func @transform_3(%arg0: i32) -> (i32, i32) {
    %c0_i32 = arith.constant 0 : i32
    %c0_i32_0 = arith.constant 0 : i32
    return %arg0, %c0_i32 : i32, i32
  }
}

</mosaic_0001>

<llo_original>
// kernel: tpu_custom_call.1
$region0: #{tpu_custom_call.1}
  #allocation0 [shape = 'u32[]', space=smem, size = 0x4, offset = 0x4, fixed_abs, tag = 'smem constant byte address 0x4 - core index']
  #allocation1 [shape = 'u32[72,128]{1,0:T(1,128)}', space=vmem, size = 0x9000, scoped, tag = 'internal scratch']
  %s0 = inlined_call_operand.hbm [shape: f32[16,128], index: 0, kind: input, shape index: {}]
  %s1 = inlined_call_operand.hbm [shape: f32[1,128], index: 1, kind: input, shape index: {}]
  %s2 = inlined_call_operand.vmem [shape: f32[1,128], index: 2, kind: input, shape index: {}]
  %s3 = inlined_call_operand.hbm [shape: f32[16,128], index: 3, kind: output, shape index: {}]
  %s4 = sld [smem:[#allocation0]]
  $region30: #{tpu_custom_call.1} parent=0
    _
  %s6 = ssub.s32 1, %s4
  %s7 = scalar_select 0, %s6, %s4
  $region1: #{tpu_custom_call.1} parent=0
    #allocation2 [shape = 'u8[8192]{0}', space=vmem, size = 0x2000, scoped, tag = 'input window, operand 0, single buffered']
    #allocation3 [shape = 's32[1]{0}', space=sflag, size = 0x4, scoped, tag = 'scoped memory for tpu_custom_call.1']
    #allocation4 [shape = 's32[1]{0}', space=sflag, size = 0x4, scoped, tag = 'scoped memory for tpu_custom_call.1']
    #allocation5 [shape = 'u8[512]{0}', space=vmem, size = 0x400, scoped, tag = 'input window, operand 1, single buffered']
    #allocation6 [shape = 's32[1]{0}', space=sflag, size = 0x4, scoped, tag = 'scoped memory for tpu_custom_call.1']
    #allocation7 [shape = 'u8[8192]{0}', space=vmem, size = 0x2000, scoped, tag = 'output window, operand 0, single buffered']
    %8 = vsyncpa [#allocation3], 0
    %9 = vsyncpa [#allocation6], 0
    %10 = vsyncpa [#allocation4], 0
    // Predicated region
    $region2: #{tpu_custom_call.1} parent=1 // pred_check
      _
    $region3: #{tpu_custom_call.1} parent=1 // pred_check_branch
      %12 = sbr.rel (0) target = $region5
    $region4: #{tpu_custom_call.1} parent=1 // pred_region
      %14 = vsyncadd [#allocation3], 0
      %s15 = sshll.u32 %s0, 4
      %s16 = int_to_ptr.hbm [resolvable:$true] %s15
      %s17 = sshll.u32 [#allocation2], 4
      %s18 = int_to_ptr.vmem [resolvable:$true] %s17
      %23 = dma.hbm_to_vmem [thread:$0]  %s16, 256, %s18, [#allocation3], 128, 128, 8
    $region5: #{tpu_custom_call.1} parent=1 // pred_fallthru
      _
    // Predicated region
    $region6: #{tpu_custom_call.1} parent=1 // pred_check
      _
    $region7: #{tpu_custom_call.1} parent=1 // pred_check_branch
      %25 = sbr.rel (0) target = $region9
    $region8: #{tpu_custom_call.1} parent=1 // pred_region
      %27 = vsyncadd [#allocation6], 0
      %s29 = sshll.u32 %s1, 4
      %s30 = int_to_ptr.hbm [resolvable:$true] %s29
      %s31 = sshll.u32 [#allocation5], 4
      %s32 = int_to_ptr.vmem [resolvable:$true] %s31
      %34 = dma.hbm_to_vmem [thread:$0]  %s30, 16, %s32, [#allocation6]
    $region9: #{tpu_custom_call.1} parent=1 // pred_fallthru
      _
    // Predicated region
    $region10: #{tpu_custom_call.1} parent=1 // pred_check
      _
    $region11: #{tpu_custom_call.1} parent=1 // pred_check_branch
      %36 = sbr.rel (0) target = $region13
    $region12: #{tpu_custom_call.1} parent=1 // pred_region
      _
    $region13: #{tpu_custom_call.1} parent=1 // pred_fallthru
      _
    // Predicated region
    $region14: #{tpu_custom_call.1} parent=1 // pred_check
      _
    $region15: #{tpu_custom_call.1} parent=1 // pred_check_branch
      %38 = sbr.rel (0) target = $region17
    $region16: #{tpu_custom_call.1} parent=1 // pred_region
      %40 = dma.done [#allocation3], 256
    $region17: #{tpu_custom_call.1} parent=1 // pred_fallthru
      _
    // Predicated region
    $region18: #{tpu_custom_call.1} parent=1 // pred_check
      _
    $region19: #{tpu_custom_call.1} parent=1 // pred_check_branch
      %42 = sbr.rel (0) target = $region21
    $region20: #{tpu_custom_call.1} parent=1 // pred_region
      %44 = dma.done [#allocation6], 16
    $region21: #{tpu_custom_call.1} parent=1 // pred_fallthru
      _
    %v45 = vld [vmem:[#allocation2] sm:$0xff]
    %v46 = vld [vmem:[#allocation2 + $0x8] sm:$0xff]
    %47 = vadd.xlane.f32.xlu0 %v45
    %v48 = vpop.xlane.xlu0 %47
    %49 = vadd.xlane.f32.xlu0 %v46
    %v50 = vpop.xlane.xlu0 %49
    %v51 = vrcp.pop 128.0
    %v52 = vmul.f32 128.0, %v51
    %v53 = vsub.f32 1.0, %v52
    %v54 = vmul.f32 %v51, %v53
    %v55 = vadd.f32 %v51, %v54
    %vm56 = vweird.f32 %v51
    %v57 = vsel %vm56, %v51, %v55
    %v58 = vmul.f32 %v48, %v57
    %v59 = vmul.f32 %v50, %v57
    %v60 = vsub.f32 %v45, %v58
    %v61 = vsub.f32 %v46, %v59
    %v62 = vmul.f32 %v60, %v60
    %v63 = vmul.f32 %v61, %v61
    %64 = vadd.xlane.f32.xlu0 %v62
    %v65 = vpop.xlane.xlu0 %64
    %66 = vadd.xlane.f32.xlu0 %v63
    %v67 = vpop.xlane.xlu0 %66
    %v68 = vmul.f32 %v65, %v57
    %v69 = vmul.f32 %v67, %v57
    %v70 = vadd.f32 %v68, 1e-05
    %v71 = vadd.f32 %v69, 1e-05
    %v72 = vrsqrt.pop %v70
    %v73 = vmul.f32 %v72, %v70
    %v74 = vmul.f32 %v73, %v72
    %v75 = vmul.f32 0.5, %v74
    %v76 = vsub.f32 1.5, %v75
    %v77 = vmul.f32 %v72, %v76
    %vm78 = vweird.f32 %v70
    %vm79 = vweird.f32 %v72
    %vm80 = vmor %vm78, %vm79
    %v81 = vsel %vm80, %v72, %v77
    %v82 = vrsqrt.pop %v71
    %v83 = vmul.f32 %v82, %v71
    %v84 = vmul.f32 %v83, %v82
    %v85 = vmul.f32 0.5, %v84
    %v86 = vsub.f32 1.5, %v85
    %v87 = vmul.f32 %v82, %v86
    %vm88 = vweird.f32 %v71
    %vm89 = vweird.f32 %v82
    %vm90 = vmor %vm88, %vm89
    %v91 = vsel %vm90, %v82, %v87
    %v92 = vmul.f32 %v60, %v81
    %v93 = vmul.f32 %v61, %v91
    %v94 = vld [vmem:[#allocation5] sm:$0x1]
    %v96 = vperm.slane %v94, 0
    %v98 = vmul.f32 %v92, %v96
    %v99 = vmul.f32 %v93, %v96
    %v100 = vld [vmem:[%s2] sm:$0x1]
    %v102 = vperm.slane %v100, 0
    %v104 = vadd.f32 %v98, %v102
    %v105 = vadd.f32 %v99, %v102
    %106 = vst [vmem:[#allocation7] sm:$0xff] %v104
    %107 = vst [vmem:[#allocation7 + $0x8] sm:$0xff] %v105
    // Predicated region
    $region22: #{tpu_custom_call.1} parent=1 // pred_check
      _
    $region23: #{tpu_custom_call.1} parent=1 // pred_check_branch
      %109 = sbr.rel (0) target = $region25
    $region24: #{tpu_custom_call.1} parent=1 // pred_region
      %111 = vsyncadd [#allocation4], 0
      %s112 = sshll.u32 [#allocation7], 4
      %s113 = int_to_ptr.vmem [resolvable:$true] %s112
      %s114 = sshll.u32 %s3, 4
      %s115 = int_to_ptr.hbm [resolvable:$true] %s114
      %120 = dma.vmem_to_hbm [thread:$0]  %s113, 256, %s115, [#allocation4], 128, 128, 8
    $region25: #{tpu_custom_call.1} parent=1 // pred_fallthru
      _
    // Predicated region
    $region26: #{tpu_custom_call.1} parent=1 // pred_check
      _
    $region27: #{tpu_custom_call.1} parent=1 // pred_check_branch
      %122 = sbr.rel (0) target = $region29
    $region28: #{tpu_custom_call.1} parent=1 // pred_region
      %124 = dma.done [#allocation4], 256
    $region29: #{tpu_custom_call.1} parent=1 // pred_fallthru
      _
    %125 = vsyncpa [#allocation3], 1
    %126 = vsyncpa [#allocation6], 1
    %127 = vsyncpa [#allocation4], 1

</llo_original>
